<compile_context>
chip_gen: v6e
topology: v6e:2x2x1
jax: 0.10.0
libtpu: 0.0.40
codegen_flags: <defaults>
</compile_context>

<pallas_src>
import functools

import jax
import jax.numpy as jnp
from jax.experimental import pallas as pl
from jax.experimental.pallas import tpu as pltpu

LANE = 128


def _round_up(n, m):
    return ((n + m - 1) // m) * m


def _mlp_kernel(xt_ref, w1_ref, b1_ref, w2_ref, b2_ref, ot_ref):
    xt = xt_ref[...]                       # (D, TB)  f32, lane-dense
    w1 = w1_ref[...]                       # (H, D)   nn.Linear layout
    d = w1.shape[1]

    # fc1 on the VPU: D outer-product FMAs, every op full lane width.
    ht = b1_ref[...] + w1[:, 0:1] * xt[0:1, :]          # (H, TB)
    for k in range(1, d):                                # static, tiny unroll
        ht = ht + w1[:, k:k + 1] * xt[k:k + 1, :]
    ht = jnp.maximum(ht, 0.0)

    # fc2 + relu on the MXU: y^T = W2 @ h^T, lane dim stays = batch (dense).
    yt = jnp.dot(w2_ref[...], ht, preferred_element_type=jnp.float32)
    yt = jnp.maximum(yt + b2_ref[...], 0.0)
    ot_ref[...] = yt.astype(ot_ref.dtype)


@functools.partial(
    jax.jit, static_argnames=("block_b", "core_parallel", "return_transposed"))
def personal_info_encoder(x, w1, b1, w2, b2, *, block_b=8192,
                          core_parallel=False, return_transposed=False):
    """x: (B, D); w1: (H, D); b1: (H,); w2: (H, H); b2: (H,)  ->  (B, H).

    Weights/biases use the nn.Linear (out_features, in_features) layout.
    """
    B, D = x.shape
    H = w1.shape[0]

    # Batch lives on the lane axis inside the kernel -> tile must be a
    # multiple of 128; cap by the lane-rounded batch so tiny batches don't
    # over-allocate.
    block_b = max(LANE, _round_up(min(block_b, _round_up(B, LANE)), LANE))
    b_pad = _round_up(B, LANE)

    # Lane-dense input: (B, D) -> (D, B).  x is only D*4 = 16 bytes per row,
    # so the transpose (and the <=127-column lane pad) is negligible traffic.
    xt = x.T
    if b_pad != B:
        xt = jnp.pad(xt, ((0, 0), (0, b_pad - B)))

    grid = (pl.cdiv(b_pad, block_b),)   # final block may be partial; padded
                                        # batch columns are independent and
                                        # sliced off below.

    sem = (pltpu.CORE_PARALLEL if core_parallel else pltpu.PARALLEL,)

    out_t = pl.pallas_call(
        _mlp_kernel,
        out_shape=jax.ShapeDtypeStruct((H, b_pad), jnp.float32),
        grid=grid,
        in_specs=[
            pl.BlockSpec((D, block_b), lambda i: (0, i)),   # x^T, batch-tiled
            pl.BlockSpec((H, D), lambda i: (0, 0)),         # resident W1
            pl.BlockSpec((H, 1), lambda i: (0, 0)),         # resident b1
            pl.BlockSpec((H, H), lambda i: (0, 0)),         # resident W2
            pl.BlockSpec((H, 1), lambda i: (0, 0)),         # resident b2
        ],
        out_specs=pl.BlockSpec((H, block_b), lambda i: (0, i)),  # lane-dense
        compiler_params=pltpu.CompilerParams(
            dimension_semantics=sem,
            # Actual footprint ~2*(8 + H)*block_b*4 B (~2.6 MiB at 8192);
            # 48 MiB is explicit headroom that still fits v7x's 64 MiB VMEM.
            vmem_limit_bytes=48 * 1024 * 1024,
        ),
    )(xt, w1, b1.reshape(H, 1), w2, b2.reshape(H, 1))

    if return_transposed:
        return out_t[:, :B]          # (H, B): for consumers with free orientation
    return out_t[:, :B].T            # (B, H): module semantics (one small pass)


def init_params(key, input_dim=4, hidden_dim=32):
    # nn.Linear init: U(-1/sqrt(fan_in), 1/sqrt(fan_in)); weight (out, in).
    k1, k2, k3, k4 = jax.random.split(key, 4)
    bound1 = 1.0 / jnp.sqrt(input_dim)
    bound2 = 1.0 / jnp.sqrt(hidden_dim)
    w1 = jax.random.uniform(k1, (hidden_dim, input_dim), jnp.float32, -bound1, bound1)
    b1 = jax.random.uniform(k2, (hidden_dim,), jnp.float32, -bound1, bound1)
    w2 = jax.random.uniform(k3, (hidden_dim, hidden_dim), jnp.float32, -bound2, bound2)
    b2 = jax.random.uniform(k4, (hidden_dim,), jnp.float32, -bound2, bound2)
    return w1, b1, w2, b2


def _reference(x, w1, b1, w2, b2):
    h = jnp.maximum(x @ w1.T + b1, 0.0)
    return jnp.maximum(h @ w2.T + b2, 0.0)


if __name__ == "__main__":
    key = jax.random.PRNGKey(0)
    kx1, kx2, kp = jax.random.split(key, 3)

    input_dim, hidden_dim = 4, 32
    w1, b1, w2, b2 = init_params(kp, input_dim, hidden_dim)

    # Lane-aligned batch, single grid step, default (large-capped) tile.
    batch = 256
    x = jax.random.normal(kx1, (batch, input_dim), dtype=jnp.float32)
    out = jax.block_until_ready(personal_info_encoder(x, w1, b1, w2, b2))
    ref = _reference(x, w1, b1, w2, b2)
    assert out.shape == (batch, hidden_dim)
    assert jnp.allclose(out, ref, atol=1e-5), "mismatch vs reference (B=256)"

    # Ragged batch + small explicit tile: exercises the 128-lane pad and the
    # multi-step pipelined grid (300 -> 384 padded, 3 grid steps of 128).
    batch2 = 300
    x2 = jax.random.normal(kx2, (batch2, input_dim), dtype=jnp.float32)
    out2 = jax.block_until_ready(
        personal_info_encoder(x2, w1, b1, w2, b2, block_b=128))
    ref2 = _reference(x2, w1, b1, w2, b2)
    assert out2.shape == (batch2, hidden_dim)
    assert jnp.allclose(out2, ref2, atol=1e-5), "mismatch vs reference (B=300)"

    print("KERNEL_OK")
</pallas_src>

<mosaic_0001>
module attributes {stable_mosaic.version = 11 : i64} {
  func.func @_mlp_kernel(%arg0: i32, %arg1: memref<4x256xf32, #tpu.memory_space<vmem>>, %arg2: memref<32x4xf32, #tpu.memory_space<vmem>>, %arg3: memref<32x1xf32, #tpu.memory_space<vmem>>, %arg4: memref<32x32xf32, #tpu.memory_space<vmem>>, %arg5: memref<32x1xf32, #tpu.memory_space<vmem>>, %arg6: memref<32x256xf32, #tpu.memory_space<vmem>>) attributes {dimension_semantics = [#tpu.dimension_semantics<parallel>], iteration_bounds = array<i64: 1>, scalar_prefetch = 0 : i64, scratch_operands = 0 : i64, tpu.core_type = #tpu.core_type<tc>, window_params = [{transform_indices = @transform_0, window_bounds = array<i64: 4, 256>}, {pipeline_mode = #tpu.pipeline_mode<synchronous>, transform_indices = @transform_1, window_bounds = array<i64: 32, 4>}, {pipeline_mode = #tpu.pipeline_mode<synchronous>, transform_indices = @transform_2, window_bounds = array<i64: 32, 1>}, {pipeline_mode = #tpu.pipeline_mode<synchronous>, transform_indices = @transform_3, window_bounds = array<i64: 32, 32>}, {pipeline_mode = #tpu.pipeline_mode<synchronous>, transform_indices = @transform_4, window_bounds = array<i64: 32, 1>}, {transform_indices = @transform_5, window_bounds = array<i64: 32, 256>}]} {
    %c0 = arith.constant 0 : index
    %c0_0 = arith.constant 0 : index
    %0 = vector.load %arg1[%c0, %c0_0] : memref<4x256xf32, #tpu.memory_space<vmem>>, vector<4x256xf32>
    %c0_1 = arith.constant 0 : index
    %c0_2 = arith.constant 0 : index
    %1 = vector.load %arg2[%c0_1, %c0_2] : memref<32x4xf32, #tpu.memory_space<vmem>>, vector<32x4xf32>
    %c0_3 = arith.constant 0 : index
    %c0_4 = arith.constant 0 : index
    %2 = vector.load %arg3[%c0_3, %c0_4] : memref<32x1xf32, #tpu.memory_space<vmem>>, vector<32x1xf32>
    %3 = vector.extract_strided_slice %1 {offsets = [0, 0], sizes = [32, 1], strides = [1, 1]} : vector<32x4xf32> to vector<32x1xf32>
    %4 = vector.extract_strided_slice %0 {offsets = [0, 0], sizes = [1, 256], strides = [1, 1]} : vector<4x256xf32> to vector<1x256xf32>
    %5 = vector.broadcast %3 : vector<32x1xf32> to vector<32x256xf32>
    %6 = vector.broadcast %4 : vector<1x256xf32> to vector<32x256xf32>
    %7 = arith.mulf %5, %6 : vector<32x256xf32>
    %8 = vector.broadcast %2 : vector<32x1xf32> to vector<32x256xf32>
    %9 = arith.addf %8, %7 : vector<32x256xf32>
    %10 = vector.extract_strided_slice %1 {offsets = [0, 1], sizes = [32, 1], strides = [1, 1]} : vector<32x4xf32> to vector<32x1xf32>
    %11 = vector.extract_strided_slice %0 {offsets = [1, 0], sizes = [1, 256], strides = [1, 1]} : vector<4x256xf32> to vector<1x256xf32>
    %12 = vector.broadcast %10 : vector<32x1xf32> to vector<32x256xf32>
    %13 = vector.broadcast %11 : vector<1x256xf32> to vector<32x256xf32>
    %14 = arith.mulf %12, %13 : vector<32x256xf32>
    %15 = arith.addf %9, %14 : vector<32x256xf32>
    %16 = vector.extract_strided_slice %1 {offsets = [0, 2], sizes = [32, 1], strides = [1, 1]} : vector<32x4xf32> to vector<32x1xf32>
    %17 = vector.extract_strided_slice %0 {offsets = [2, 0], sizes = [1, 256], strides = [1, 1]} : vector<4x256xf32> to vector<1x256xf32>
    %18 = vector.broadcast %16 : vector<32x1xf32> to vector<32x256xf32>
    %19 = vector.broadcast %17 : vector<1x256xf32> to vector<32x256xf32>
    %20 = arith.mulf %18, %19 : vector<32x256xf32>
    %21 = arith.addf %15, %20 : vector<32x256xf32>
    %22 = vector.extract_strided_slice %1 {offsets = [0, 3], sizes = [32, 1], strides = [1, 1]} : vector<32x4xf32> to vector<32x1xf32>
    %23 = vector.extract_strided_slice %0 {offsets = [3, 0], sizes = [1, 256], strides = [1, 1]} : vector<4x256xf32> to vector<1x256xf32>
    %24 = vector.broadcast %22 : vector<32x1xf32> to vector<32x256xf32>
    %25 = vector.broadcast %23 : vector<1x256xf32> to vector<32x256xf32>
    %26 = arith.mulf %24, %25 : vector<32x256xf32>
    %27 = arith.addf %21, %26 : vector<32x256xf32>
    %cst = arith.constant 0.000000e+00 : f32
    %28 = vector.broadcast %cst : f32 to vector<32x256xf32>
    %29 = arith.maximumf %27, %28 : vector<32x256xf32>
    %c0_5 = arith.constant 0 : index
    %c0_6 = arith.constant 0 : index
    %30 = vector.load %arg4[%c0_5, %c0_6] : memref<32x32xf32, #tpu.memory_space<vmem>>, vector<32x32xf32>
    %cst_7 = arith.constant dense<0.000000e+00> : vector<32x256xf32>
    %31 = tpu.matmul %30, %29, %cst_7 {dimension_numbers = #tpu.dot_dimension_numbers<[1], [0], [0], [1], [0, 0, 1, 1], [], []>} : vector<32x32xf32>, vector<32x256xf32>, vector<32x256xf32> -> vector<32x256xf32>
    %c0_8 = arith.constant 0 : index
    %c0_9 = arith.constant 0 : index
    %32 = vector.load %arg5[%c0_8, %c0_9] : memref<32x1xf32, #tpu.memory_space<vmem>>, vector<32x1xf32>
    %33 = vector.broadcast %32 : vector<32x1xf32> to vector<32x256xf32>
    %34 = arith.addf %31, %33 : vector<32x256xf32>
    %cst_10 = arith.constant 0.000000e+00 : f32
    %35 = vector.broadcast %cst_10 : f32 to vector<32x256xf32>
    %36 = arith.maximumf %34, %35 : vector<32x256xf32>
    %c0_11 = arith.constant 0 : index
    %c0_12 = arith.constant 0 : index
    %37 = vector.load %arg6[%c0_11, %c0_12] : memref<32x256xf32, #tpu.memory_space<vmem>>, vector<32x256xf32>
    tpu.vector_store %arg6[%c0_11, %c0_12], %36 {strides = array<i32>} : memref<32x256xf32, #tpu.memory_space<vmem>>, vector<32x256xf32>,
    return
  }
  func.func @transform_0(%arg0: i32) -> (i32, i32) {
    %c0_i32 = arith.constant 0 : i32
    %c0_i32_0 = arith.constant 0 : i32
    return %c0_i32, %arg0 : i32, i32
  }
  func.func @transform_1(%arg0: i32) -> (i32, i32) {
    %c0_i32 = arith.constant 0 : i32
    %c0_i32_0 = arith.constant 0 : i32
    %c0_i32_1 = arith.constant 0 : i32
    return %c0_i32, %c0_i32_0 : i32, i32
  }
  func.func @transform_2(%arg0: i32) -> (i32, i32) {
    %c0_i32 = arith.constant 0 : i32
    %c0_i32_0 = arith.constant 0 : i32
    %c0_i32_1 = arith.constant 0 : i32
    return %c0_i32, %c0_i32_0 : i32, i32
  }
  func.func @transform_3(%arg0: i32) -> (i32, i32) {
    %c0_i32 = arith.constant 0 : i32
    %c0_i32_0 = arith.constant 0 : i32
    %c0_i32_1 = arith.constant 0 : i32
    return %c0_i32, %c0_i32_0 : i32, i32
  }
  func.func @transform_4(%arg0: i32) -> (i32, i32) {
    %c0_i32 = arith.constant 0 : i32
    %c0_i32_0 = arith.constant 0 : i32
    %c0_i32_1 = arith.constant 0 : i32
    return %c0_i32, %c0_i32_0 : i32, i32
  }
  func.func @transform_5(%arg0: i32) -> (i32, i32) {
    %c0_i32 = arith.constant 0 : i32
    %c0_i32_0 = arith.constant 0 : i32
    return %c0_i32, %arg0 : i32, i32
  }
}

</mosaic_0001>

<llo_original>
// kernel: personal_info_encoder.1
$region0: #{personal_info_encoder.1}
  #allocation0 [shape = 'u32[]', space=smem, size = 0x4, offset = 0x4, fixed_abs, tag = 'smem constant byte address 0x4 - core index']
  #allocation1 [shape = 'u32[144,128]{1,0:T(1,128)}', space=vmem, size = 0x12000, scoped, tag = 'internal scratch']
  %s0 = inlined_call_operand.vmem [shape: f32[4,256], index: 0, kind: input, shape index: {}]
  %s1 = inlined_call_operand.vmem [shape: f32[32,4], index: 1, kind: input, shape index: {}]
  %s2 = inlined_call_operand.vmem [shape: f32[32,1], index: 2, kind: input, shape index: {}]
  %s3 = inlined_call_operand.vmem [shape: f32[32,32], index: 3, kind: input, shape index: {}]
  %s4 = inlined_call_operand.vmem [shape: f32[32,1], index: 4, kind: input, shape index: {}]
  %s5 = inlined_call_operand.hbm [shape: f32[32,256], index: 5, kind: output, shape index: {}]
  %s6 = sld [smem:[#allocation0]]
  $region30: #{personal_info_encoder.1} parent=0
    _
  %s8 = ssub.s32 1, %s6
  %s9 = scalar_select 0, %s8, %s6
  $region1: #{personal_info_encoder.1} parent=0
    #allocation2 [shape = 'u8[32768]{0}', space=vmem, size = 0x8000, scoped, tag = 'output window, operand 0, single buffered']
    #allocation3 [shape = 's32[1]{0}', space=sflag, size = 0x4, scoped, tag = 'scoped memory for personal_info_encoder.1']
    %10 = vsyncpa [#allocation3], 0
    // Predicated region
    $region2: #{personal_info_encoder.1} parent=1 // pred_check
      _
    $region3: #{personal_info_encoder.1} parent=1 // pred_check_branch
      %12 = sbr.rel (0) target = $region5
    $region4: #{personal_info_encoder.1} parent=1 // pred_region
      _
    $region5: #{personal_info_encoder.1} parent=1 // pred_fallthru
      _
    // Predicated region
    $region6: #{personal_info_encoder.1} parent=1 // pred_check
      _
    $region7: #{personal_info_encoder.1} parent=1 // pred_check_branch
      %14 = sbr.rel (0) target = $region9
    $region8: #{personal_info_encoder.1} parent=1 // pred_region
      _
    $region9: #{personal_info_encoder.1} parent=1 // pred_fallthru
      _
    // Predicated region
    $region10: #{personal_info_encoder.1} parent=1 // pred_check
      _
    $region11: #{personal_info_encoder.1} parent=1 // pred_check_branch
      %16 = sbr.rel (0) target = $region13
    $region12: #{personal_info_encoder.1} parent=1 // pred_region
      _
    $region13: #{personal_info_encoder.1} parent=1 // pred_fallthru
      _
    // Predicated region
    $region14: #{personal_info_encoder.1} parent=1 // pred_check
      _
    $region15: #{personal_info_encoder.1} parent=1 // pred_check_branch
      %18 = sbr.rel (0) target = $region17
    $region16: #{personal_info_encoder.1} parent=1 // pred_region
      _
    $region17: #{personal_info_encoder.1} parent=1 // pred_fallthru
      _
    // Predicated region
    $region18: #{personal_info_encoder.1} parent=1 // pred_check
      _
    $region19: #{personal_info_encoder.1} parent=1 // pred_check_branch
      %20 = sbr.rel (0) target = $region21
    $region20: #{personal_info_encoder.1} parent=1 // pred_region
      _
    $region21: #{personal_info_encoder.1} parent=1 // pred_fallthru
      _
    %v21 = vld [vmem:[%s0] sm:$0xff]
    %v22 = vld [vmem:[%s1] sm:$0xff]
    %v23 = vld [vmem:[%s1 + $0x8] sm:$0xff]
    %v24 = vld [vmem:[%s1 + $0x10] sm:$0xff]
    %v25 = vld [vmem:[%s1 + $0x18] sm:$0xff]
    %v26 = vld [vmem:[%s2] sm:$0xff]
    %v27 = vld [vmem:[%s2 + $0x8] sm:$0xff]
    %v28 = vld [vmem:[%s2 + $0x10] sm:$0xff]
    %v29 = vld [vmem:[%s2 + $0x18] sm:$0xff]
    %31 = vset.pattern.permute.xlu0 0
    %32 = vperm.xlu0 %31, %v22
    %v33 = vpop.permute.xlu0 %32
    %36 = vset.pattern.permute.xlu0 0
    %37 = vperm.xlu0 %36, %v23
    %v38 = vpop.permute.xlu0 %37
    %41 = vset.pattern.permute.xlu0 0
    %42 = vperm.xlu0 %41, %v24
    %v43 = vpop.permute.xlu0 %42
    %46 = vset.pattern.permute.xlu0 0
    %47 = vperm.xlu0 %46, %v25
    %v48 = vpop.permute.xlu0 %47
    %v51 = vlaneseq
    %v52 = vshrl.u32 %v51, 7
    %v53 = vsub.s32 0, %v52
    %v54 = vrot.slane %v21, %v53
    %v55 = vlaneseq
    %v56 = vshrl.u32 %v55, 7
    %v57 = vsub.s32 4, %v56
    %v58 = vrot.slane %v21, %v57
    %v61 = vlaneseq
    %v62 = vshrl.u32 %v61, 7
    %v63 = vsub.s32 0, %v62
    %v64 = vrot.slane %v54, %v63
    %v65 = vlaneseq
    %v66 = vshrl.u32 %v65, 7
    %v67 = vsub.s32 0, %v66
    %v68 = vrot.slane %v58, %v67
    %v69 = vmul.f32 %v33, %v64
    %v70 = vmul.f32 %v33, %v68
    %v71 = vmul.f32 %v38, %v64
    %v72 = vmul.f32 %v38, %v68
    %v73 = vmul.f32 %v43, %v64
    %v74 = vmul.f32 %v43, %v68
    %v75 = vmul.f32 %v48, %v64
    %v76 = vmul.f32 %v48, %v68
    %78 = vset.pattern.permute.xlu0 0
    %79 = vperm.xlu0 %78, %v26
    %v80 = vpop.permute.xlu0 %79
    %83 = vset.pattern.permute.xlu0 0
    %84 = vperm.xlu0 %83, %v27
    %v85 = vpop.permute.xlu0 %84
    %88 = vset.pattern.permute.xlu0 0
    %89 = vperm.xlu0 %88, %v28
    %v90 = vpop.permute.xlu0 %89
    %93 = vset.pattern.permute.xlu0 0
    %94 = vperm.xlu0 %93, %v29
    %v95 = vpop.permute.xlu0 %94
    %v97 = vadd.f32 %v80, %v69
    %v98 = vadd.f32 %v80, %v70
    %v99 = vadd.f32 %v85, %v71
    %v100 = vadd.f32 %v85, %v72
    %v101 = vadd.f32 %v90, %v73
    %v102 = vadd.f32 %v90, %v74
    %v103 = vadd.f32 %v95, %v75
    %v104 = vadd.f32 %v95, %v76
    %105 = vset.pattern.permute.xlu0 1
    %106 = vperm.xlu0 %105, %v22
    %v107 = vpop.permute.xlu0 %106
    %109 = vset.pattern.permute.xlu0 1
    %110 = vperm.xlu0 %109, %v23
    %v111 = vpop.permute.xlu0 %110
    %113 = vset.pattern.permute.xlu0 1
    %114 = vperm.xlu0 %113, %v24
    %v115 = vpop.permute.xlu0 %114
    %117 = vset.pattern.permute.xlu0 1
    %118 = vperm.xlu0 %117, %v25
    %v119 = vpop.permute.xlu0 %118
    %v121 = vlaneseq
    %v122 = vshrl.u32 %v121, 7
    %v123 = vsub.s32 1, %v122
    %v124 = vrot.slane %v21, %v123
    %v125 = vlaneseq
    %v126 = vshrl.u32 %v125, 7
    %v127 = vsub.s32 5, %v126
    %v128 = vrot.slane %v21, %v127
    %v131 = vlaneseq
    %v132 = vshrl.u32 %v131, 7
    %v133 = vsub.s32 1, %v132
    %v134 = vrot.slane %v124, %v133
    %v135 = vlaneseq
    %v136 = vshrl.u32 %v135, 7
    %v137 = vsub.s32 1, %v136
    %v138 = vrot.slane %v128, %v137
    %v139 = vmul.f32 %v107, %v134
    %v140 = vmul.f32 %v107, %v138
    %v141 = vmul.f32 %v111, %v134
    %v142 = vmul.f32 %v111, %v138
    %v143 = vmul.f32 %v115, %v134
    %v144 = vmul.f32 %v115, %v138
    %v145 = vmul.f32 %v119, %v134
    %v146 = vmul.f32 %v119, %v138
    %v147 = vadd.f32 %v97, %v139
    %v148 = vadd.f32 %v98, %v140
    %v149 = vadd.f32 %v99, %v141
    %v150 = vadd.f32 %v100, %v142
    %v151 = vadd.f32 %v101, %v143
    %v152 = vadd.f32 %v102, %v144
    %v153 = vadd.f32 %v103, %v145
    %v154 = vadd.f32 %v104, %v146
    %155 = vset.pattern.permute.xlu0 2
    %156 = vperm.xlu0 %155, %v22
    %v157 = vpop.permute.xlu0 %156
    %159 = vset.pattern.permute.xlu0 2
    %160 = vperm.xlu0 %159, %v23
    %v161 = vpop.permute.xlu0 %160
    %163 = vset.pattern.permute.xlu0 2
    %164 = vperm.xlu0 %163, %v24
    %v165 = vpop.permute.xlu0 %164
    %167 = vset.pattern.permute.xlu0 2
    %168 = vperm.xlu0 %167, %v25
    %v169 = vpop.permute.xlu0 %168
    %v171 = vlaneseq
    %v172 = vshrl.u32 %v171, 7
    %v173 = vsub.s32 2, %v172
    %v174 = vrot.slane %v21, %v173
    %v175 = vlaneseq
    %v176 = vshrl.u32 %v175, 7
    %v177 = vsub.s32 6, %v176
    %v178 = vrot.slane %v21, %v177
    %v181 = vlaneseq
    %v182 = vshrl.u32 %v181, 7
    %v183 = vsub.s32 2, %v182
    %v184 = vrot.slane %v174, %v183
    %v185 = vlaneseq
    %v186 = vshrl.u32 %v185, 7
    %v187 = vsub.s32 2, %v186
    %v188 = vrot.slane %v178, %v187
    %v189 = vmul.f32 %v157, %v184
    %v190 = vmul.f32 %v157, %v188
    %v191 = vmul.f32 %v161, %v184
    %v192 = vmul.f32 %v161, %v188
    %v193 = vmul.f32 %v165, %v184
    %v194 = vmul.f32 %v165, %v188
    %v195 = vmul.f32 %v169, %v184
    %v196 = vmul.f32 %v169, %v188
    %v197 = vadd.f32 %v147, %v189
    %v198 = vadd.f32 %v148, %v190
    %v199 = vadd.f32 %v149, %v191
    %v200 = vadd.f32 %v150, %v192
    %v201 = vadd.f32 %v151, %v193
    %v202 = vadd.f32 %v152, %v194
    %v203 = vadd.f32 %v153, %v195
    %v204 = vadd.f32 %v154, %v196
    %205 = vset.pattern.permute.xlu0 3
    %206 = vperm.xlu0 %205, %v22
    %v207 = vpop.permute.xlu0 %206
    %209 = vset.pattern.permute.xlu0 3
    %210 = vperm.xlu0 %209, %v23
    %v211 = vpop.permute.xlu0 %210
    %213 = vset.pattern.permute.xlu0 3
    %214 = vperm.xlu0 %213, %v24
    %v215 = vpop.permute.xlu0 %214
    %217 = vset.pattern.permute.xlu0 3
    %218 = vperm.xlu0 %217, %v25
    %v219 = vpop.permute.xlu0 %218
    %v221 = vlaneseq
    %v222 = vshrl.u32 %v221, 7
    %v223 = vsub.s32 3, %v222
    %v224 = vrot.slane %v21, %v223
    %v225 = vlaneseq
    %v226 = vshrl.u32 %v225, 7
    %v227 = vsub.s32 7, %v226
    %v228 = vrot.slane %v21, %v227
    %v231 = vlaneseq
    %v232 = vshrl.u32 %v231, 7
    %v233 = vsub.s32 3, %v232
    %v234 = vrot.slane %v224, %v233
    %v235 = vlaneseq
    %v236 = vshrl.u32 %v235, 7
    %v237 = vsub.s32 3, %v236
    %v238 = vrot.slane %v228, %v237
    %v239 = vmul.f32 %v207, %v234
    %v240 = vmul.f32 %v207, %v238
    %v241 = vmul.f32 %v211, %v234
    %v242 = vmul.f32 %v211, %v238
    %v243 = vmul.f32 %v215, %v234
    %v244 = vmul.f32 %v215, %v238
    %v245 = vmul.f32 %v219, %v234
    %v246 = vmul.f32 %v219, %v238
    %v247 = vadd.f32 %v197, %v239
    %v248 = vadd.f32 %v198, %v240
    %v249 = vadd.f32 %v199, %v241
    %v250 = vadd.f32 %v200, %v242
    %v251 = vadd.f32 %v201, %v243
    %v252 = vadd.f32 %v202, %v244
    %v253 = vadd.f32 %v203, %v245
    %v254 = vadd.f32 %v204, %v246
    %v255 = vmax.f32 %v247, 0.0
    %v256 = vmax.f32 %v248, 0.0
    %v257 = vmax.f32 %v249, 0.0
    %v258 = vmax.f32 %v250, 0.0
    %v259 = vmax.f32 %v251, 0.0
    %v260 = vmax.f32 %v252, 0.0
    %v261 = vmax.f32 %v253, 0.0
    %v262 = vmax.f32 %v254, 0.0
    %v263 = vld [vmem:[%s3] sm:$0xff]
    %v264 = vld [vmem:[%s3 + $0x8] sm:$0xff]
    %v265 = vld [vmem:[%s3 + $0x10] sm:$0xff]
    %v266 = vld [vmem:[%s3 + $0x18] sm:$0xff]
    %v267 = vld [vmem:[%s4] sm:$0xff]
    %v268 = vld [vmem:[%s4 + $0x8] sm:$0xff]
    %v269 = vld [vmem:[%s4 + $0x10] sm:$0xff]
    %v270 = vld [vmem:[%s4 + $0x18] sm:$0xff]
    %272 = vset.pattern.permute.xlu0 0
    %273 = vperm.xlu0 %272, %v267
    %v274 = vpop.permute.xlu0 %273
    %277 = vset.pattern.permute.xlu0 0
    %278 = vperm.xlu0 %277, %v268
    %v279 = vpop.permute.xlu0 %278
    %282 = vset.pattern.permute.xlu0 0
    %283 = vperm.xlu0 %282, %v269
    %v284 = vpop.permute.xlu0 %283
    %287 = vset.pattern.permute.xlu0 0
    %288 = vperm.xlu0 %287, %v270
    %v289 = vpop.permute.xlu0 %288
    %vm291 = vcmask 261120
    %v293 = vsel %vm291, %v263, 0
    %v296 = vsel %vm291, %v264, 0
    %v299 = vsel %vm291, %v265, 0
    %v302 = vsel %vm291, %v266, 0
    %304 = vmatprep.subr.mxu0 0.0
    %305 = vmatpush1.msra.mxu0 0.0
    %306 = vmatprep.subr.mxu0 0.0
    %307 = vmatpush1.msra.mxu0 0.0
    %308 = vmatprep.subr.mxu0 0.0
    %309 = vmatpush1.msra.mxu0 0.0
    %310 = vmatprep.subr.mxu0 0.0
    %311 = vmatpush1.msra.mxu0 0.0
    %312 = vmatprep.subr.mxu0 0.0
    %313 = vmatpush1.msra.mxu0 0.0
    %314 = vmatprep.subr.mxu0 0.0
    %315 = vmatpush1.msra.mxu0 0.0
    %316 = vmatprep.subr.mxu0 0.0
    %317 = vmatpush1.msra.mxu0 0.0
    %318 = vmatprep.subr.mxu0 0.0
    %319 = vmatpush1.msra.mxu0 0.0
    %320 = vmatprep.subr.mxu0 0.0
    %321 = vmatpush1.msra.mxu0 0.0
    %322 = vmatprep.subr.mxu0 0.0
    %323 = vmatpush1.msra.mxu0 0.0
    %324 = vmatprep.subr.mxu0 0.0
    %325 = vmatpush1.msra.mxu0 0.0
    %326 = vmatprep.subr.mxu0 0.0
    %327 = vmatpush1.msra.mxu0 0.0
    %328 = vmatprep.subr.mxu0 %v262
    %329 = vmatpush1.msra.mxu0 %v261
    %330 = vmatprep.subr.mxu0 %v260
    %331 = vmatpush1.msra.mxu0 %v259
    %332 = vmatprep.subr.mxu0 %v258
    %333 = vmatpush1.msra.mxu0 %v257
    %334 = vmatprep.subr.mxu0 %v256
    %335 = vmatpush1.msra.mxu0 %v255
    %336 = vmatprep.subr.mxu0 0.0
    %337 = vmatpush2.msra.mxu0 0.0
    %338 = vmatprep.subr.mxu0 0.0
    %339 = vmatpush2.msra.mxu0 0.0
    %340 = vmatprep.subr.mxu0 0.0
    %341 = vmatpush2.msra.mxu0 0.0
    %342 = vmatprep.subr.mxu0 0.0
    %343 = vmatpush2.msra.mxu0 0.0
    %344 = vmatprep.subr.mxu0 0.0
    %345 = vmatpush2.msra.mxu0 0.0
    %346 = vmatprep.subr.mxu0 0.0
    %347 = vmatpush2.msra.mxu0 0.0
    %348 = vmatprep.subr.mxu0 0.0
    %349 = vmatpush2.msra.mxu0 0.0
    %350 = vmatprep.subr.mxu0 0.0
    %351 = vmatpush2.msra.mxu0 0.0
    %352 = vmatprep.subr.mxu0 0.0
    %353 = vmatpush2.msra.mxu0 0.0
    %354 = vmatprep.subr.mxu0 0.0
    %355 = vmatpush2.msra.mxu0 0.0
    %356 = vmatprep.subr.mxu0 0.0
    %357 = vmatpush2.msra.mxu0 0.0
    %358 = vmatprep.subr.mxu0 0.0
    %359 = vmatpush2.msra.mxu0 0.0
    %360 = vmatprep.subr.mxu0 0.0
    %361 = vmatpush2.msra.mxu0 0.0
    %362 = vmatprep.subr.mxu0 0.0
    %363 = vmatpush2.msra.mxu0 0.0
    %364 = vmatprep.subr.mxu0 0.0
    %365 = vmatpush2.msra.mxu0 0.0
    %366 = vmatprep.subr.mxu0 0.0
    %367 = vmatpush2.msra.mxu0 0.0
    %368 = vmatprep.mubr.f32.mxu0 0.0
    %369 = vmatmul.mubr.f32.gmra.mxu0 %v293
    %v370 = vpop.f32.mrf.mxu0
    %v371 = vadd.f32 %v274, %v370
    %v372 = vpop.f32.mrf.mxu0
    %v373 = vadd.f32 %v274, %v372
    %374 = vmatprep.mubr.f32.mxu0 0.0
    %375 = vmatmul.mubr.f32.gmra.mxu0 %v296
    %v376 = vpop.f32.mrf.mxu0
    %v377 = vadd.f32 %v279, %v376
    %v378 = vpop.f32.mrf.mxu0
    %v379 = vadd.f32 %v279, %v378
    %380 = vmatprep.mubr.f32.mxu0 0.0
    %381 = vmatmul.mubr.f32.gmra.mxu0 %v299
    %v382 = vpop.f32.mrf.mxu0
    %v383 = vadd.f32 %v284, %v382
    %v384 = vpop.f32.mrf.mxu0
    %v385 = vadd.f32 %v284, %v384
    %386 = vmatprep.mubr.f32.mxu0 0.0
    %387 = vmatmul.mubr.f32.gmra.mxu0 %v302
    %v388 = vpop.f32.mrf.mxu0
    %v389 = vadd.f32 %v289, %v388
    %v390 = vpop.f32.mrf.mxu0
    %v391 = vadd.f32 %v289, %v390
    %392 = vdwg.mxu0
    %v393 = vmax.f32 %v371, 0.0
    %v394 = vmax.f32 %v373, 0.0
    %v395 = vmax.f32 %v377, 0.0
    %v396 = vmax.f32 %v379, 0.0
    %v397 = vmax.f32 %v383, 0.0
    %v398 = vmax.f32 %v385, 0.0
    %v399 = vmax.f32 %v389, 0.0
    %v400 = vmax.f32 %v391, 0.0
    %401 = vst [vmem:[#allocation2] sm:$0xff] %v393
    %402 = vst [vmem:[#allocation2 + $0x8] sm:$0xff] %v394
    %403 = vst [vmem:[#allocation2 + $0x10] sm:$0xff] %v395
    %404 = vst [vmem:[#allocation2 + $0x18] sm:$0xff] %v396
    %405 = vst [vmem:[#allocation2 + $0x20] sm:$0xff] %v397
    %406 = vst [vmem:[#allocation2 + $0x28] sm:$0xff] %v398
    %407 = vst [vmem:[#allocation2 + $0x30] sm:$0xff] %v399
    %408 = vst [vmem:[#allocation2 + $0x38] sm:$0xff] %v400
    // Predicated region
    $region22: #{personal_info_encoder.1} parent=1 // pred_check
      _
    $region23: #{personal_info_encoder.1} parent=1 // pred_check_branch
      %410 = sbr.rel (0) target = $region25
    $region24: #{personal_info_encoder.1} parent=1 // pred_region
      %s412 = ssub.s32 1024, 1024
      %413 = vsyncadd [#allocation3], %s412
      %s414 = sshll.u32 [#allocation2], 4
      %s415 = int_to_ptr.vmem [resolvable:$true] %s414
      %420 = dma.vmem_to_hbm [thread:$0]  %s415, 1024, %s5, [#allocation3], 256, 256, 16
    $region25: #{personal_info_encoder.1} parent=1 // pred_fallthru
      _
    // Predicated region
    $region26: #{personal_info_encoder.1} parent=1 // pred_check
      _
    $region27: #{personal_info_encoder.1} parent=1 // pred_check_branch
      %422 = sbr.rel (0) target = $region29
    $region28: #{personal_info_encoder.1} parent=1 // pred_region
      %423 = dma.done [#allocation3], 1024
    $region29: #{personal_info_encoder.1} parent=1 // pred_fallthru
      _
    %424 = vsyncpa [#allocation3], 1

</llo_original>
